<compile_context>
chip_gen: v5e
topology: v5e:2x2
jax: 0.10.0
libtpu: 0.0.40
codegen_flags: <defaults>
</compile_context>

<pallas_src>
import jax
import jax.numpy as jnp
from jax.experimental import pallas as pl
from jax.experimental.pallas import tpu as pltpu

F_IN = 1100      # input features
H = 20           # hidden width
N_HIDDEN = 4     # number of 20->20 hidden layers


def mlp_kernel(x_ref, w1_ref, wh_ref, b_ref, o_ref):
    """Whole 6-layer MLP for one batch tile.

    x_ref : (block_b, 1100) f32    streamed from HBM (cast to bf16 in-kernel)
    w1_ref: (1100, 20)      bf16   layer-1 weight
    wh_ref: (5, 20, 20)     f32    rows 0..3 = hidden layers 2..5,
                                   row 4 = output layer, out dim zero-padded 1->20
    b_ref : (6, 20)         f32    rows 0..4 = biases 1..5, row 5 col 0 = bias 6
    o_ref : (block_b, 1)    out dtype
    """
    # Layer 1: the only op touching the HBM-streamed operand. Cast x -> bf16
    # in-register (free on the VPU under the mem-bound regime), MXU matmul
    # with f32 accumulation.
    x = x_ref[...].astype(jnp.bfloat16)
    z = jnp.dot(x, w1_ref[...], preferred_element_type=jnp.float32)
    h = jax.nn.sigmoid(z + b_ref[0:1, :])

    # Hidden layers 2..5: tiny 20x20 matmuls, kept entirely in f32
    # (~4 KFLOP/row, invisible next to the HBM stream).
    for i in range(N_HIDDEN):
        z = jnp.dot(h, wh_ref[i], preferred_element_type=jnp.float32)
        h = jax.nn.sigmoid(z + b_ref[i + 1:i + 2, :])

    # Layer 6: weight was zero-padded (20,1)->(20,20); only column 0 is real.
    z = jnp.dot(h, wh_ref[N_HIDDEN], preferred_element_type=jnp.float32)
    z = z[:, 0:1] + b_ref[5:6, 0:1]
    o_ref[...] = jax.nn.sigmoid(z).astype(o_ref.dtype)


def pack_params(params):
    """(w,b) pairs with w:(in,out) f32, b:(1,out) f32 -> (w1_bf16, wh_f32, bias_f32).

    Call once and reuse — the packed blocks are grid-invariant.
    """
    (w1, b1), (w2, b2), (w3, b3), (w4, b4), (w5, b5), (w6, b6) = params
    w1p = w1.astype(jnp.bfloat16)                                   # (1100, 20)
    w6p = jnp.pad(w6, ((0, 0), (0, H - 1)))                         # (20, 20)
    wh = jnp.stack([w2, w3, w4, w5, w6p]).astype(jnp.float32)       # (5, 20, 20)
    b6p = jnp.pad(b6, ((0, 0), (0, H - 1)))                         # (1, 20)
    bias = jnp.concatenate([b1, b2, b3, b4, b5, b6p],
                           axis=0).astype(jnp.float32)              # (6, 20)
    return w1p, wh, bias


def minha_net_forward(x, packed_params, *, single_tile_rows=256,
                      max_tile_rows=1024):
    """Pallas forward of `minha_net`. x: (B, 1100). Returns squeeze((B, 1))."""
    w1, wh, bias = packed_params
    B, F = x.shape
    assert F == F_IN, "expected 1100 input features"

    if B <= single_tile_rows:
        # Small batches are per-call-overhead bound: run as a single grid step.
        block_b = B
    else:
        # >= 2 grid steps so the "parallel" axis feeds both v7x TensorCores;
        # tiles capped at 1024 rows (4.4 MB f32 -> 8.8 MB double-buffered,
        # fits every generation's scoped VMEM without flag games).
        half = -(-B // 2)
        block_b = min(max_tile_rows, ((half + 255) // 256) * 256)
    num_tiles = pl.cdiv(B, block_b)

    out = pl.pallas_call(
        mlp_kernel,
        out_shape=jax.ShapeDtypeStruct((B, 1), x.dtype),
        grid=(num_tiles,),
        in_specs=[
            # x streams tile-by-tile straight from HBM in its native dtype.
            # A ragged last tile (block_b not dividing B) relies on Pallas
            # boundary padding — the garbage rows only affect out-of-bounds
            # output rows, whose stores are masked off.
            pl.BlockSpec((block_b, F_IN), lambda i: (i, 0)),
            # Grid-invariant parameter blocks: DMA'd once, resident in VMEM.
            pl.BlockSpec(w1.shape, lambda i: (0, 0)),
            pl.BlockSpec(wh.shape, lambda i: (0, 0, 0)),
            pl.BlockSpec(bias.shape, lambda i: (0, 0)),
        ],
        out_specs=pl.BlockSpec((block_b, 1), lambda i: (i, 0)),
        compiler_params=pltpu.CompilerParams(
            dimension_semantics=("parallel",),
            vmem_limit_bytes=32 * 1024 * 1024,
        ),
    )(x, w1, wh, bias)

    # torch.squeeze removes all size-1 dims: (B, 1) -> (B,)  (0-d if B == 1).
    return jnp.squeeze(out)


def init_params(key):
    """Deterministic init mimicking PyTorch's default Linear init
    (uniform in [-1/sqrt(fan_in), 1/sqrt(fan_in)])."""
    dims = [(1100, 20), (20, 20), (20, 20), (20, 20), (20, 20), (20, 1)]
    params = []
    for (fan_in, fan_out) in dims:
        key, kw, kb = jax.random.split(key, 3)
        bound = 1.0 / jnp.sqrt(jnp.float32(fan_in))
        w = jax.random.uniform(kw, (fan_in, fan_out), jnp.float32,
                               minval=-bound, maxval=bound)
        b = jax.random.uniform(kb, (1, fan_out), jnp.float32,
                               minval=-bound, maxval=bound)
        params.append((w, b))
    return params


def reference_forward(x, params):
    h = x
    for (w, b) in params:
        h = jax.nn.sigmoid(h @ w + b)
    return jnp.squeeze(h)


if __name__ == "__main__":
    key = jax.random.PRNGKey(0)
    key, kx1, kx2 = jax.random.split(key, 3)

    params = init_params(key)
    packed = pack_params(params)          # hoisted: packed once, reused per call

    fwd = jax.jit(minha_net_forward)

    # Small batch: exercises the single-step latency path.
    B1 = 16
    x1 = jax.random.normal(kx1, (B1, F_IN), dtype=jnp.float32)
    out1 = fwd(x1, packed)
    jax.block_until_ready(out1)
    ref1 = reference_forward(x1, params)
    assert out1.shape == (B1,), out1.shape
    # only layer 1 runs with bf16 operands (f32 accumulation) -> tight tolerance
    assert jnp.allclose(out1, ref1, atol=5e-3, rtol=5e-3), "mismatch (small batch)"

    # Non-divisible batch: exercises the multi-tile path with a ragged last tile.
    B2 = 300
    x2 = jax.random.normal(kx2, (B2, F_IN), dtype=jnp.float32)
    out2 = fwd(x2, packed)
    jax.block_until_ready(out2)
    ref2 = reference_forward(x2, params)
    assert out2.shape == (B2,), out2.shape
    assert jnp.allclose(out2, ref2, atol=5e-3, rtol=5e-3), "mismatch (ragged batch)"

    print("KERNEL_OK")
</pallas_src>

<mosaic_0001>
module attributes {stable_mosaic.version = 11 : i64} {
  func.func @mlp_kernel(%arg0: i32, %arg1: memref<16x1100xf32, #tpu.memory_space<vmem>>, %arg2: memref<1100x20xbf16, #tpu.memory_space<vmem>>, %arg3: memref<5x20x20xf32, #tpu.memory_space<vmem>>, %arg4: memref<6x20xf32, #tpu.memory_space<vmem>>, %arg5: memref<16x1xf32, #tpu.memory_space<vmem>>) attributes {dimension_semantics = [#tpu.dimension_semantics<parallel>], iteration_bounds = array<i64: 1>, scalar_prefetch = 0 : i64, scratch_operands = 0 : i64, tpu.core_type = #tpu.core_type<tc>, window_params = [{transform_indices = @transform_0, window_bounds = array<i64: 16, 1100>}, {pipeline_mode = #tpu.pipeline_mode<synchronous>, transform_indices = @transform_1, window_bounds = array<i64: 1100, 20>}, {pipeline_mode = #tpu.pipeline_mode<synchronous>, transform_indices = @transform_2, window_bounds = array<i64: 5, 20, 20>}, {pipeline_mode = #tpu.pipeline_mode<synchronous>, transform_indices = @transform_3, window_bounds = array<i64: 6, 20>}, {transform_indices = @transform_4, window_bounds = array<i64: 16, 1>}]} {
    %c0 = arith.constant 0 : index
    %c0_0 = arith.constant 0 : index
    %0 = vector.load %arg1[%c0, %c0_0] : memref<16x1100xf32, #tpu.memory_space<vmem>>, vector<16x1100xf32>
    %1 = arith.truncf %0 : vector<16x1100xf32> to vector<16x1100xbf16>
    %c0_1 = arith.constant 0 : index
    %c0_2 = arith.constant 0 : index
    %2 = vector.load %arg2[%c0_1, %c0_2] : memref<1100x20xbf16, #tpu.memory_space<vmem>>, vector<1100x20xbf16>
    %cst = arith.constant dense<0.000000e+00> : vector<16x20xf32>
    %3 = tpu.matmul %1, %2, %cst {dimension_numbers = #tpu.dot_dimension_numbers<[1], [0], [0], [1], [0, 0, 1, 1], [], []>} : vector<16x1100xbf16>, vector<1100x20xbf16>, vector<16x20xf32> -> vector<16x20xf32>
    %c0_3 = arith.constant 0 : index
    %c0_4 = arith.constant 0 : index
    %4 = vector.load %arg4[%c0_3, %c0_4] : memref<6x20xf32, #tpu.memory_space<vmem>>, vector<1x20xf32>
    %5 = vector.broadcast %4 : vector<1x20xf32> to vector<16x20xf32>
    %6 = arith.addf %3, %5 : vector<16x20xf32>
    %7 = arith.negf %6 : vector<16x20xf32>
    %8 = math.exp %7 : vector<16x20xf32>
    %cst_5 = arith.constant 1.000000e+00 : f32
    %9 = vector.broadcast %cst_5 : f32 to vector<16x20xf32>
    %10 = arith.addf %9, %8 : vector<16x20xf32>
    %11 = arith.divf %9, %10 : vector<16x20xf32>
    %c0_6 = arith.constant 0 : index
    %c0_7 = arith.constant 0 : index
    %c0_8 = arith.constant 0 : index
    %12 = vector.load %arg3[%c0_6, %c0_7, %c0_8] : memref<5x20x20xf32, #tpu.memory_space<vmem>>, vector<1x20x20xf32>
    %13 = vector.shape_cast %12 : vector<1x20x20xf32> to vector<20x20xf32>
    %cst_9 = arith.constant dense<0.000000e+00> : vector<16x20xf32>
    %14 = tpu.matmul %11, %13, %cst_9 {dimension_numbers = #tpu.dot_dimension_numbers<[1], [0], [0], [1], [0, 0, 1, 1], [], []>} : vector<16x20xf32>, vector<20x20xf32>, vector<16x20xf32> -> vector<16x20xf32>
    %c1 = arith.constant 1 : index
    %c0_10 = arith.constant 0 : index
    %15 = vector.load %arg4[%c1, %c0_10] : memref<6x20xf32, #tpu.memory_space<vmem>>, vector<1x20xf32>
    %16 = vector.broadcast %15 : vector<1x20xf32> to vector<16x20xf32>
    %17 = arith.addf %14, %16 : vector<16x20xf32>
    %18 = arith.negf %17 : vector<16x20xf32>
    %19 = math.exp %18 : vector<16x20xf32>
    %cst_11 = arith.constant 1.000000e+00 : f32
    %20 = vector.broadcast %cst_11 : f32 to vector<16x20xf32>
    %21 = arith.addf %20, %19 : vector<16x20xf32>
    %22 = arith.divf %20, %21 : vector<16x20xf32>
    %c1_12 = arith.constant 1 : index
    %c0_13 = arith.constant 0 : index
    %c0_14 = arith.constant 0 : index
    %23 = vector.load %arg3[%c1_12, %c0_13, %c0_14] : memref<5x20x20xf32, #tpu.memory_space<vmem>>, vector<1x20x20xf32>
    %24 = vector.shape_cast %23 : vector<1x20x20xf32> to vector<20x20xf32>
    %cst_15 = arith.constant dense<0.000000e+00> : vector<16x20xf32>
    %25 = tpu.matmul %22, %24, %cst_15 {dimension_numbers = #tpu.dot_dimension_numbers<[1], [0], [0], [1], [0, 0, 1, 1], [], []>} : vector<16x20xf32>, vector<20x20xf32>, vector<16x20xf32> -> vector<16x20xf32>
    %c2 = arith.constant 2 : index
    %c0_16 = arith.constant 0 : index
    %26 = vector.load %arg4[%c2, %c0_16] : memref<6x20xf32, #tpu.memory_space<vmem>>, vector<1x20xf32>
    %27 = vector.broadcast %26 : vector<1x20xf32> to vector<16x20xf32>
    %28 = arith.addf %25, %27 : vector<16x20xf32>
    %29 = arith.negf %28 : vector<16x20xf32>
    %30 = math.exp %29 : vector<16x20xf32>
    %cst_17 = arith.constant 1.000000e+00 : f32
    %31 = vector.broadcast %cst_17 : f32 to vector<16x20xf32>
    %32 = arith.addf %31, %30 : vector<16x20xf32>
    %33 = arith.divf %31, %32 : vector<16x20xf32>
    %c2_18 = arith.constant 2 : index
    %c0_19 = arith.constant 0 : index
    %c0_20 = arith.constant 0 : index
    %34 = vector.load %arg3[%c2_18, %c0_19, %c0_20] : memref<5x20x20xf32, #tpu.memory_space<vmem>>, vector<1x20x20xf32>
    %35 = vector.shape_cast %34 : vector<1x20x20xf32> to vector<20x20xf32>
    %cst_21 = arith.constant dense<0.000000e+00> : vector<16x20xf32>
    %36 = tpu.matmul %33, %35, %cst_21 {dimension_numbers = #tpu.dot_dimension_numbers<[1], [0], [0], [1], [0, 0, 1, 1], [], []>} : vector<16x20xf32>, vector<20x20xf32>, vector<16x20xf32> -> vector<16x20xf32>
    %c3 = arith.constant 3 : index
    %c0_22 = arith.constant 0 : index
    %37 = vector.load %arg4[%c3, %c0_22] : memref<6x20xf32, #tpu.memory_space<vmem>>, vector<1x20xf32>
    %38 = vector.broadcast %37 : vector<1x20xf32> to vector<16x20xf32>
    %39 = arith.addf %36, %38 : vector<16x20xf32>
    %40 = arith.negf %39 : vector<16x20xf32>
    %41 = math.exp %40 : vector<16x20xf32>
    %cst_23 = arith.constant 1.000000e+00 : f32
    %42 = vector.broadcast %cst_23 : f32 to vector<16x20xf32>
    %43 = arith.addf %42, %41 : vector<16x20xf32>
    %44 = arith.divf %42, %43 : vector<16x20xf32>
    %c3_24 = arith.constant 3 : index
    %c0_25 = arith.constant 0 : index
    %c0_26 = arith.constant 0 : index
    %45 = vector.load %arg3[%c3_24, %c0_25, %c0_26] : memref<5x20x20xf32, #tpu.memory_space<vmem>>, vector<1x20x20xf32>
    %46 = vector.shape_cast %45 : vector<1x20x20xf32> to vector<20x20xf32>
    %cst_27 = arith.constant dense<0.000000e+00> : vector<16x20xf32>
    %47 = tpu.matmul %44, %46, %cst_27 {dimension_numbers = #tpu.dot_dimension_numbers<[1], [0], [0], [1], [0, 0, 1, 1], [], []>} : vector<16x20xf32>, vector<20x20xf32>, vector<16x20xf32> -> vector<16x20xf32>
    %c4 = arith.constant 4 : index
    %c0_28 = arith.constant 0 : index
    %48 = vector.load %arg4[%c4, %c0_28] : memref<6x20xf32, #tpu.memory_space<vmem>>, vector<1x20xf32>
    %49 = vector.broadcast %48 : vector<1x20xf32> to vector<16x20xf32>
    %50 = arith.addf %47, %49 : vector<16x20xf32>
    %51 = arith.negf %50 : vector<16x20xf32>
    %52 = math.exp %51 : vector<16x20xf32>
    %cst_29 = arith.constant 1.000000e+00 : f32
    %53 = vector.broadcast %cst_29 : f32 to vector<16x20xf32>
    %54 = arith.addf %53, %52 : vector<16x20xf32>
    %55 = arith.divf %53, %54 : vector<16x20xf32>
    %c4_30 = arith.constant 4 : index
    %c0_31 = arith.constant 0 : index
    %c0_32 = arith.constant 0 : index
    %56 = vector.load %arg3[%c4_30, %c0_31, %c0_32] : memref<5x20x20xf32, #tpu.memory_space<vmem>>, vector<1x20x20xf32>
    %57 = vector.shape_cast %56 : vector<1x20x20xf32> to vector<20x20xf32>
    %cst_33 = arith.constant dense<0.000000e+00> : vector<16x20xf32>
    %58 = tpu.matmul %55, %57, %cst_33 {dimension_numbers = #tpu.dot_dimension_numbers<[1], [0], [0], [1], [0, 0, 1, 1], [], []>} : vector<16x20xf32>, vector<20x20xf32>, vector<16x20xf32> -> vector<16x20xf32>
    %59 = vector.extract_strided_slice %58 {offsets = [0, 0], sizes = [16, 1], strides = [1, 1]} : vector<16x20xf32> to vector<16x1xf32>
    %c5 = arith.constant 5 : index
    %c0_34 = arith.constant 0 : index
    %60 = vector.load %arg4[%c5, %c0_34] : memref<6x20xf32, #tpu.memory_space<vmem>>, vector<1x1xf32>
    %61 = vector.broadcast %60 : vector<1x1xf32> to vector<16x1xf32>
    %62 = arith.addf %59, %61 : vector<16x1xf32>
    %63 = arith.negf %62 : vector<16x1xf32>
    %64 = math.exp %63 : vector<16x1xf32>
    %cst_35 = arith.constant 1.000000e+00 : f32
    %65 = vector.broadcast %cst_35 : f32 to vector<16x1xf32>
    %66 = arith.addf %65, %64 : vector<16x1xf32>
    %67 = arith.divf %65, %66 : vector<16x1xf32>
    %c0_36 = arith.constant 0 : index
    %c0_37 = arith.constant 0 : index
    %68 = vector.load %arg5[%c0_36, %c0_37] : memref<16x1xf32, #tpu.memory_space<vmem>>, vector<16x1xf32>
    tpu.vector_store %arg5[%c0_36, %c0_37], %67 {strides = array<i32>} : memref<16x1xf32, #tpu.memory_space<vmem>>, vector<16x1xf32>,
    return
  }
  func.func @transform_0(%arg0: i32) -> (i32, i32) {
    %c0_i32 = arith.constant 0 : i32
    %c0_i32_0 = arith.constant 0 : i32
    return %arg0, %c0_i32 : i32, i32
  }
  func.func @transform_1(%arg0: i32) -> (i32, i32) {
    %c0_i32 = arith.constant 0 : i32
    %c0_i32_0 = arith.constant 0 : i32
    %c0_i32_1 = arith.constant 0 : i32
    return %c0_i32, %c0_i32_0 : i32, i32
  }
  func.func @transform_2(%arg0: i32) -> (i32, i32, i32) {
    %c0_i32 = arith.constant 0 : i32
    %c0_i32_0 = arith.constant 0 : i32
    %c0_i32_1 = arith.constant 0 : i32
    %c0_i32_2 = arith.constant 0 : i32
    return %c0_i32, %c0_i32_0, %c0_i32_1 : i32, i32, i32
  }
  func.func @transform_3(%arg0: i32) -> (i32, i32) {
    %c0_i32 = arith.constant 0 : i32
    %c0_i32_0 = arith.constant 0 : i32
    %c0_i32_1 = arith.constant 0 : i32
    return %c0_i32, %c0_i32_0 : i32, i32
  }
  func.func @transform_4(%arg0: i32) -> (i32, i32) {
    %c0_i32 = arith.constant 0 : i32
    %c0_i32_0 = arith.constant 0 : i32
    return %arg0, %c0_i32 : i32, i32
  }
}

</mosaic_0001>

<llo_original>
// kernel: minha_net_forward.1
$region0: #{minha_net_forward.1}
  #allocation0 [shape = 'u32[]', space=smem, size = 0x4, offset = 0x4, fixed_abs, tag = 'smem constant byte address 0x4 - core index']
  #allocation1 [shape = 'u32[72,128]{1,0:T(1,128)}', space=vmem, size = 0x9000, scoped, tag = 'internal scratch']
  %s0 = inlined_call_operand.vmem [shape: f32[16,1100], index: 0, kind: input, shape index: {}]
  %s1 = inlined_call_operand.vmem [shape: bf16[1100,20], index: 1, kind: input, shape index: {}]
  %s2 = inlined_call_operand.vmem [shape: f32[5,20,20], index: 2, kind: input, shape index: {}]
  %s3 = inlined_call_operand.vmem [shape: f32[6,20], index: 3, kind: input, shape index: {}]
  %s4 = inlined_call_operand.vmem [shape: f32[16,1], index: 4, kind: output, shape index: {}]
  %s5 = sld [smem:[#allocation0]]
  $region26: #{minha_net_forward.1} parent=0
    _
  %s7 = ssub.s32 1, %s5
  %s8 = scalar_select 0, %s7, %s5
  // Predicated region
  $region2: #{minha_net_forward.1} parent=0 // pred_check
    _
  $region3: #{minha_net_forward.1} parent=0 // pred_check_branch
    %10 = sbr.rel (0) target = $region5
  $region4: #{minha_net_forward.1} parent=0 // pred_region
    _
  $region5: #{minha_net_forward.1} parent=0 // pred_fallthru
    _
  // Predicated region
  $region6: #{minha_net_forward.1} parent=0 // pred_check
    _
  $region7: #{minha_net_forward.1} parent=0 // pred_check_branch
    %12 = sbr.rel (0) target = $region9
  $region8: #{minha_net_forward.1} parent=0 // pred_region
    _
  $region9: #{minha_net_forward.1} parent=0 // pred_fallthru
    _
  // Predicated region
  $region10: #{minha_net_forward.1} parent=0 // pred_check
    _
  $region11: #{minha_net_forward.1} parent=0 // pred_check_branch
    %14 = sbr.rel (0) target = $region13
  $region12: #{minha_net_forward.1} parent=0 // pred_region
    _
  $region13: #{minha_net_forward.1} parent=0 // pred_fallthru
    _
  // Predicated region
  $region14: #{minha_net_forward.1} parent=0 // pred_check
    _
  $region15: #{minha_net_forward.1} parent=0 // pred_check_branch
    %16 = sbr.rel (0) target = $region17
  $region16: #{minha_net_forward.1} parent=0 // pred_region
    _
  $region17: #{minha_net_forward.1} parent=0 // pred_fallthru
    _
  %v18 = vld [vmem:[%s0] sm:$0xff]
  %v19 = vld [vmem:[%s0 + $0x8] sm:$0xff]
  %v20 = vld [vmem:[%s0 + $0x10] sm:$0xff]
  %v21 = vld [vmem:[%s0 + $0x18] sm:$0xff]
  %v22 = vld [vmem:[%s0 + $0x20] sm:$0xff]
  %v23 = vld [vmem:[%s0 + $0x28] sm:$0xff]
  %v24 = vld [vmem:[%s0 + $0x30] sm:$0xff]
  %v25 = vld [vmem:[%s0 + $0x38] sm:$0xff]
  %v26 = vld [vmem:[%s0 + $0x40] sm:$0xff]
  %v27 = vld [vmem:[%s0 + $0x48] sm:$0xff]
  %v28 = vld [vmem:[%s0 + $0x50] sm:$0xff]
  %v29 = vld [vmem:[%s0 + $0x58] sm:$0xff]
  %v30 = vld [vmem:[%s0 + $0x60] sm:$0xff]
  %v31 = vld [vmem:[%s0 + $0x68] sm:$0xff]
  %v32 = vld [vmem:[%s0 + $0x70] sm:$0xff]
  %v33 = vld [vmem:[%s0 + $0x78] sm:$0xff]
  %v34 = vld [vmem:[%s0 + $0x80] sm:$0xff]
  %v35 = vld [vmem:[%s0 + $0x88] sm:$0xff]
  %v36 = vpack.c.bf16 %v27, %v18
  %v37 = vpack.c.bf16 %v28, %v19
  %v38 = vpack.c.bf16 %v29, %v20
  %v39 = vpack.c.bf16 %v30, %v21
  %v40 = vpack.c.bf16 %v31, %v22
  %v41 = vpack.c.bf16 %v32, %v23
  %v42 = vpack.c.bf16 %v33, %v24
  %v43 = vpack.c.bf16 %v34, %v25
  %v44 = vpack.c.bf16 %v35, %v26
  %v45 = vld [vmem:[%s1] sm:$0xf]
  %v46 = vld [vmem:[%s1 + $0x4] sm:$0xf]
  %v47 = vld [vmem:[%s1 + $0x8] sm:$0xf]
  %v48 = vld [vmem:[%s1 + $0xc] sm:$0xf]
  %v49 = vld [vmem:[%s1 + $0x10] sm:$0xf]
  %v50 = vld [vmem:[%s1 + $0x14] sm:$0xf]
  %v51 = vld [vmem:[%s1 + $0x18] sm:$0xf]
  %v52 = vld [vmem:[%s1 + $0x1c] sm:$0xf]
  %v53 = vld [vmem:[%s1 + $0x20] sm:$0xf]
  %v54 = vld [vmem:[%s1 + $0x24] sm:$0xf]
  %v55 = vld [vmem:[%s1 + $0x28] sm:$0xf]
  %v56 = vld [vmem:[%s1 + $0x2c] sm:$0xf]
  %v57 = vld [vmem:[%s1 + $0x30] sm:$0xf]
  %v58 = vld [vmem:[%s1 + $0x34] sm:$0xf]
  %v59 = vld [vmem:[%s1 + $0x38] sm:$0xf]
  %v60 = vld [vmem:[%s1 + $0x3c] sm:$0xf]
  %v61 = vld [vmem:[%s1 + $0x40] sm:$0xf]
  %v62 = vld [vmem:[%s1 + $0x44] sm:$0xf]
  %v63 = vld [vmem:[%s1 + $0x48] sm:$0xf]
  %v64 = vld [vmem:[%s1 + $0x4c] sm:$0xf]
  %v65 = vld [vmem:[%s1 + $0x50] sm:$0xf]
  %v66 = vld [vmem:[%s1 + $0x54] sm:$0xf]
  %v67 = vld [vmem:[%s1 + $0x58] sm:$0xf]
  %v68 = vld [vmem:[%s1 + $0x5c] sm:$0xf]
  %v69 = vld [vmem:[%s1 + $0x60] sm:$0xf]
  %v70 = vld [vmem:[%s1 + $0x64] sm:$0xf]
  %v71 = vld [vmem:[%s1 + $0x68] sm:$0xf]
  %v72 = vld [vmem:[%s1 + $0x6c] sm:$0xf]
  %v73 = vld [vmem:[%s1 + $0x70] sm:$0xf]
  %v74 = vld [vmem:[%s1 + $0x74] sm:$0xf]
  %v75 = vld [vmem:[%s1 + $0x78] sm:$0xf]
  %v76 = vld [vmem:[%s1 + $0x7c] sm:$0xf]
  %v77 = vld [vmem:[%s1 + $0x80] sm:$0xf]
  %v78 = vld [vmem:[%s1 + $0x84] sm:$0xf]
  %v79 = vld [vmem:[%s1 + $0x88] sm:$0xf]
  %v80 = vld [vmem:[%s1 + $0x8c] sm:$0xf]
  %v81 = vld [vmem:[%s1 + $0x90] sm:$0xf]
  %v82 = vld [vmem:[%s1 + $0x94] sm:$0xf]
  %v83 = vld [vmem:[%s1 + $0x98] sm:$0xf]
  %v84 = vld [vmem:[%s1 + $0x9c] sm:$0xf]
  %v85 = vld [vmem:[%s1 + $0xa0] sm:$0xf]
  %v86 = vld [vmem:[%s1 + $0xa4] sm:$0xf]
  %v87 = vld [vmem:[%s1 + $0xa8] sm:$0xf]
  %v88 = vld [vmem:[%s1 + $0xac] sm:$0xf]
  %v89 = vld [vmem:[%s1 + $0xb0] sm:$0xf]
  %v90 = vld [vmem:[%s1 + $0xb4] sm:$0xf]
  %v91 = vld [vmem:[%s1 + $0xb8] sm:$0xf]
  %v92 = vld [vmem:[%s1 + $0xbc] sm:$0xf]
  %v93 = vld [vmem:[%s1 + $0xc0] sm:$0xf]
  %v94 = vld [vmem:[%s1 + $0xc4] sm:$0xf]
  %v95 = vld [vmem:[%s1 + $0xc8] sm:$0xf]
  %v96 = vld [vmem:[%s1 + $0xcc] sm:$0xf]
  %v97 = vld [vmem:[%s1 + $0xd0] sm:$0xf]
  %v98 = vld [vmem:[%s1 + $0xd4] sm:$0xf]
  %v99 = vld [vmem:[%s1 + $0xd8] sm:$0xf]
  %v100 = vld [vmem:[%s1 + $0xdc] sm:$0xf]
  %v101 = vld [vmem:[%s1 + $0xe0] sm:$0xf]
  %v102 = vld [vmem:[%s1 + $0xe4] sm:$0xf]
  %v103 = vld [vmem:[%s1 + $0xe8] sm:$0xf]
  %v104 = vld [vmem:[%s1 + $0xec] sm:$0xf]
  %v105 = vld [vmem:[%s1 + $0xf0] sm:$0xf]
  %v106 = vld [vmem:[%s1 + $0xf4] sm:$0xf]
  %v107 = vld [vmem:[%s1 + $0xf8] sm:$0xf]
  %v108 = vld [vmem:[%s1 + $0xfc] sm:$0xf]
  %v109 = vld [vmem:[%s1 + $0x100] sm:$0xf]
  %v110 = vld [vmem:[%s1 + $0x104] sm:$0xf]
  %v111 = vld [vmem:[%s1 + $0x108] sm:$0xf]
  %v112 = vld [vmem:[%s1 + $0x10c] sm:$0xf]
  %v113 = vld [vmem:[%s1 + $0x110] sm:$0xf]
  %v114 = vld [vmem:[%s1 + $0x114] sm:$0xf]
  %v115 = vld [vmem:[%s1 + $0x118] sm:$0xf]
  %v116 = vld [vmem:[%s1 + $0x11c] sm:$0xf]
  %v117 = vld [vmem:[%s1 + $0x120] sm:$0xf]
  %v118 = vld [vmem:[%s1 + $0x124] sm:$0xf]
  %v119 = vld [vmem:[%s1 + $0x128] sm:$0xf]
  %v120 = vld [vmem:[%s1 + $0x12c] sm:$0xf]
  %v121 = vld [vmem:[%s1 + $0x130] sm:$0xf]
  %v122 = vld [vmem:[%s1 + $0x134] sm:$0xf]
  %v123 = vld [vmem:[%s1 + $0x138] sm:$0xf]
  %v124 = vld [vmem:[%s1 + $0x13c] sm:$0xf]
  %v125 = vld [vmem:[%s1 + $0x140] sm:$0xf]
  %v126 = vld [vmem:[%s1 + $0x144] sm:$0xf]
  %v127 = vld [vmem:[%s1 + $0x148] sm:$0xf]
  %v128 = vld [vmem:[%s1 + $0x14c] sm:$0xf]
  %v129 = vld [vmem:[%s1 + $0x150] sm:$0xf]
  %v130 = vld [vmem:[%s1 + $0x154] sm:$0xf]
  %v131 = vld [vmem:[%s1 + $0x158] sm:$0xf]
  %v132 = vld [vmem:[%s1 + $0x15c] sm:$0xf]
  %v133 = vld [vmem:[%s1 + $0x160] sm:$0xf]
  %v134 = vld [vmem:[%s1 + $0x164] sm:$0xf]
  %v135 = vld [vmem:[%s1 + $0x168] sm:$0xf]
  %v136 = vld [vmem:[%s1 + $0x16c] sm:$0xf]
  %v137 = vld [vmem:[%s1 + $0x170] sm:$0xf]
  %v138 = vld [vmem:[%s1 + $0x174] sm:$0xf]
  %v139 = vld [vmem:[%s1 + $0x178] sm:$0xf]
  %v140 = vld [vmem:[%s1 + $0x17c] sm:$0xf]
  %v141 = vld [vmem:[%s1 + $0x180] sm:$0xf]
  %v142 = vld [vmem:[%s1 + $0x184] sm:$0xf]
  %v143 = vld [vmem:[%s1 + $0x188] sm:$0xf]
  %v144 = vld [vmem:[%s1 + $0x18c] sm:$0xf]
  %v145 = vld [vmem:[%s1 + $0x190] sm:$0xf]
  %v146 = vld [vmem:[%s1 + $0x194] sm:$0xf]
  %v147 = vld [vmem:[%s1 + $0x198] sm:$0xf]
  %v148 = vld [vmem:[%s1 + $0x19c] sm:$0xf]
  %v149 = vld [vmem:[%s1 + $0x1a0] sm:$0xf]
  %v150 = vld [vmem:[%s1 + $0x1a4] sm:$0xf]
  %v151 = vld [vmem:[%s1 + $0x1a8] sm:$0xf]
  %v152 = vld [vmem:[%s1 + $0x1ac] sm:$0xf]
  %v153 = vld [vmem:[%s1 + $0x1b0] sm:$0xf]
  %v154 = vld [vmem:[%s1 + $0x1b4] sm:$0xf]
  %v155 = vld [vmem:[%s1 + $0x1b8] sm:$0xf]
  %v156 = vld [vmem:[%s1 + $0x1bc] sm:$0xf]
  %v157 = vld [vmem:[%s1 + $0x1c0] sm:$0xf]
  %v158 = vld [vmem:[%s1 + $0x1c4] sm:$0xf]
  %v159 = vld [vmem:[%s1 + $0x1c8] sm:$0xf]
  %v160 = vld [vmem:[%s1 + $0x1cc] sm:$0xf]
  %v161 = vld [vmem:[%s1 + $0x1d0] sm:$0xf]
  %v162 = vld [vmem:[%s1 + $0x1d4] sm:$0xf]
  %v163 = vld [vmem:[%s1 + $0x1d8] sm:$0xf]
  %v164 = vld [vmem:[%s1 + $0x1dc] sm:$0xf]
  %v165 = vld [vmem:[%s1 + $0x1e0] sm:$0xf]
  %v166 = vld [vmem:[%s1 + $0x1e4] sm:$0xf]
  %v167 = vld [vmem:[%s1 + $0x1e8] sm:$0xf]
  %v168 = vld [vmem:[%s1 + $0x1ec] sm:$0xf]
  %v169 = vld [vmem:[%s1 + $0x1f0] sm:$0xf]
  %v170 = vld [vmem:[%s1 + $0x1f4] sm:$0xf]
  %v171 = vld [vmem:[%s1 + $0x1f8] sm:$0xf]
  %v172 = vld [vmem:[%s1 + $0x1fc] sm:$0xf]
  %v173 = vld [vmem:[%s1 + $0x200] sm:$0xf]
  %v174 = vld [vmem:[%s1 + $0x204] sm:$0xf]
  %v175 = vld [vmem:[%s1 + $0x208] sm:$0xf]
  %v176 = vld [vmem:[%s1 + $0x20c] sm:$0xf]
  %v177 = vld [vmem:[%s1 + $0x210] sm:$0xf]
  %v178 = vld [vmem:[%s1 + $0x214] sm:$0xf]
  %v179 = vld [vmem:[%s1 + $0x218] sm:$0xf]
  %v180 = vld [vmem:[%s1 + $0x21c] sm:$0xf]
  %v181 = vld [vmem:[%s1 + $0x220] sm:$0xf]
  %v182 = vld [vmem:[%s1 + $0x224] sm:$0x3]
  %v183 = vld [vmem:[%s3] sm:$0x1]
  %v184 = vperm.slane %v183, 0
  %v323 = vunpack.c.l.b16 %v45
  %v324 = vunpack.c.l.b16 %v46
  %v325 = vunpack.c.l.b16 %v47
  %v326 = vunpack.c.l.b16 %v48
  %v327 = vunpack.c.l.b16 %v49
  %v328 = vunpack.c.l.b16 %v50
  %v329 = vunpack.c.l.b16 %v51
  %v330 = vunpack.c.l.b16 %v52
  %v331 = vunpack.c.l.b16 %v53
  %v332 = vunpack.c.l.b16 %v54
  %v333 = vunpack.c.l.b16 %v55
  %v334 = vunpack.c.l.b16 %v56
  %v335 = vunpack.c.l.b16 %v57
  %v336 = vunpack.c.l.b16 %v58
  %v337 = vunpack.c.l.b16 %v59
  %v338 = vunpack.c.l.b16 %v60
  %v339 = vunpack.c.l.b16 %v61
  %v340 = vunpack.c.l.b16 %v62
  %v341 = vunpack.c.l.b16 %v63
  %v342 = vunpack.c.l.b16 %v64
  %v343 = vunpack.c.l.b16 %v65
  %v344 = vunpack.c.l.b16 %v66
  %v345 = vunpack.c.l.b16 %v67
  %v346 = vunpack.c.l.b16 %v68
  %v347 = vunpack.c.l.b16 %v69
  %v348 = vunpack.c.l.b16 %v70
  %v349 = vunpack.c.l.b16 %v71
  %v350 = vunpack.c.l.b16 %v72
  %v351 = vunpack.c.l.b16 %v73
  %v352 = vunpack.c.l.b16 %v74
  %v353 = vunpack.c.l.b16 %v75
  %v354 = vunpack.c.l.b16 %v76
  %v355 = vunpack.c.l.b16 %v77
  %v356 = vunpack.c.l.b16 %v78
  %v357 = vunpack.c.l.b16 %v79
  %v358 = vunpack.c.l.b16 %v80
  %v359 = vunpack.c.l.b16 %v81
  %v360 = vunpack.c.l.b16 %v82
  %v361 = vunpack.c.l.b16 %v83
  %v362 = vunpack.c.l.b16 %v84
  %v363 = vunpack.c.l.b16 %v85
  %v364 = vunpack.c.l.b16 %v86
  %v365 = vunpack.c.l.b16 %v87
  %v366 = vunpack.c.l.b16 %v88
  %v367 = vunpack.c.l.b16 %v89
  %v368 = vunpack.c.l.b16 %v90
  %v369 = vunpack.c.l.b16 %v91
  %v370 = vunpack.c.l.b16 %v92
  %v371 = vunpack.c.l.b16 %v93
  %v372 = vunpack.c.l.b16 %v94
  %v373 = vunpack.c.l.b16 %v95
  %v374 = vunpack.c.l.b16 %v96
  %v375 = vunpack.c.l.b16 %v97
  %v376 = vunpack.c.l.b16 %v98
  %v377 = vunpack.c.l.b16 %v99
  %v378 = vunpack.c.l.b16 %v100
  %v379 = vunpack.c.l.b16 %v101
  %v380 = vunpack.c.l.b16 %v102
  %v381 = vunpack.c.l.b16 %v103
  %v382 = vunpack.c.l.b16 %v104
  %v383 = vunpack.c.l.b16 %v105
  %v384 = vunpack.c.l.b16 %v106
  %v385 = vunpack.c.l.b16 %v107
  %v386 = vunpack.c.l.b16 %v108
  %v387 = vunpack.c.l.b16 %v109
  %v388 = vunpack.c.l.b16 %v110
  %v389 = vunpack.c.l.b16 %v111
  %v390 = vunpack.c.l.b16 %v112
  %v391 = vunpack.c.l.b16 %v113
  %v392 = vunpack.c.l.b16 %v114
  %v393 = vunpack.c.l.b16 %v115
  %v394 = vunpack.c.l.b16 %v116
  %v395 = vunpack.c.l.b16 %v117
  %v396 = vunpack.c.l.b16 %v118
  %v397 = vunpack.c.l.b16 %v119
  %v398 = vunpack.c.l.b16 %v120
  %v399 = vunpack.c.l.b16 %v121
  %v400 = vunpack.c.l.b16 %v122
  %v401 = vunpack.c.l.b16 %v123
  %v402 = vunpack.c.l.b16 %v124
  %v403 = vunpack.c.l.b16 %v125
  %v404 = vunpack.c.l.b16 %v126
  %v405 = vunpack.c.l.b16 %v127
  %v406 = vunpack.c.l.b16 %v128
  %v407 = vunpack.c.l.b16 %v129
  %v408 = vunpack.c.l.b16 %v130
  %v409 = vunpack.c.l.b16 %v131
  %v410 = vunpack.c.l.b16 %v132
  %v411 = vunpack.c.l.b16 %v133
  %v412 = vunpack.c.l.b16 %v134
  %v413 = vunpack.c.l.b16 %v135
  %v414 = vunpack.c.l.b16 %v136
  %v415 = vunpack.c.l.b16 %v137
  %v416 = vunpack.c.l.b16 %v138
  %v417 = vunpack.c.l.b16 %v139
  %v418 = vunpack.c.l.b16 %v140
  %v419 = vunpack.c.l.b16 %v141
  %v420 = vunpack.c.l.b16 %v142
  %v421 = vunpack.c.l.b16 %v143
  %v422 = vunpack.c.l.b16 %v144
  %v423 = vunpack.c.l.b16 %v145
  %v424 = vunpack.c.l.b16 %v146
  %v425 = vunpack.c.l.b16 %v147
  %v426 = vunpack.c.l.b16 %v148
  %v427 = vunpack.c.l.b16 %v149
  %v428 = vunpack.c.l.b16 %v150
  %v429 = vunpack.c.l.b16 %v151
  %v430 = vunpack.c.l.b16 %v152
  %v431 = vunpack.c.l.b16 %v153
  %v432 = vunpack.c.l.b16 %v154
  %v433 = vunpack.c.l.b16 %v155
  %v434 = vunpack.c.l.b16 %v156
  %v435 = vunpack.c.l.b16 %v157
  %v436 = vunpack.c.l.b16 %v158
  %v437 = vunpack.c.l.b16 %v159
  %v438 = vunpack.c.l.b16 %v160
  %v439 = vunpack.c.l.b16 %v161
  %v440 = vunpack.c.l.b16 %v162
  %v441 = vunpack.c.l.b16 %v163
  %v442 = vunpack.c.l.b16 %v164
  %v443 = vunpack.c.l.b16 %v165
  %v444 = vunpack.c.l.b16 %v166
  %v445 = vunpack.c.l.b16 %v167
  %v446 = vunpack.c.l.b16 %v168
  %v447 = vunpack.c.l.b16 %v169
  %v448 = vunpack.c.l.b16 %v170
  %v449 = vunpack.c.l.b16 %v171
  %v450 = vunpack.c.l.b16 %v172
  %v451 = vunpack.c.l.b16 %v173
  %v452 = vunpack.c.l.b16 %v174
  %v453 = vunpack.c.l.b16 %v175
  %v454 = vunpack.c.l.b16 %v176
  %v455 = vunpack.c.l.b16 %v177
  %v456 = vunpack.c.l.b16 %v178
  %v457 = vunpack.c.l.b16 %v179
  %v458 = vunpack.c.l.b16 %v180
  %v459 = vunpack.c.l.b16 %v181
  %v460 = vunpack.c.l.b16 %v182
  %v461 = vpack.c.b16 %v324, %v323
  %v462 = vpack.c.b16 %v326, %v325
  %v463 = vpack.c.b16 %v328, %v327
  %v464 = vpack.c.b16 %v330, %v329
  %v465 = vpack.c.b16 %v332, %v331
  %v466 = vpack.c.b16 %v334, %v333
  %v467 = vpack.c.b16 %v336, %v335
  %v468 = vpack.c.b16 %v338, %v337
  %v469 = vpack.c.b16 %v340, %v339
  %v470 = vpack.c.b16 %v342, %v341
  %v471 = vpack.c.b16 %v344, %v343
  %v472 = vpack.c.b16 %v346, %v345
  %v473 = vpack.c.b16 %v348, %v347
  %v474 = vpack.c.b16 %v350, %v349
  %v475 = vpack.c.b16 %v352, %v351
  %v476 = vpack.c.b16 %v354, %v353
  %v477 = vpack.c.b16 %v356, %v355
  %v478 = vpack.c.b16 %v358, %v357
  %v479 = vpack.c.b16 %v360, %v359
  %v480 = vpack.c.b16 %v362, %v361
  %v481 = vpack.c.b16 %v364, %v363
  %v482 = vpack.c.b16 %v366, %v365
  %v483 = vpack.c.b16 %v368, %v367
  %v484 = vpack.c.b16 %v370, %v369
  %v485 = vpack.c.b16 %v372, %v371
  %v486 = vpack.c.b16 %v374, %v373
  %v487 = vpack.c.b16 %v376, %v375
  %v488 = vpack.c.b16 %v378, %v377
  %v489 = vpack.c.b16 %v380, %v379
  %v490 = vpack.c.b16 %v382, %v381
  %v491 = vpack.c.b16 %v384, %v383
  %v492 = vpack.c.b16 %v386, %v385
  %v493 = vpack.c.b16 %v388, %v387
  %v494 = vpack.c.b16 %v390, %v389
  %v495 = vpack.c.b16 %v392, %v391
  %v496 = vpack.c.b16 %v394, %v393
  %v497 = vpack.c.b16 %v396, %v395
  %v498 = vpack.c.b16 %v398, %v397
  %v499 = vpack.c.b16 %v400, %v399
  %v500 = vpack.c.b16 %v402, %v401
  %v501 = vpack.c.b16 %v404, %v403
  %v502 = vpack.c.b16 %v406, %v405
  %v503 = vpack.c.b16 %v408, %v407
  %v504 = vpack.c.b16 %v410, %v409
  %v505 = vpack.c.b16 %v412, %v411
  %v506 = vpack.c.b16 %v414, %v413
  %v507 = vpack.c.b16 %v416, %v415
  %v508 = vpack.c.b16 %v418, %v417
  %v509 = vpack.c.b16 %v420, %v419
  %v510 = vpack.c.b16 %v422, %v421
  %v511 = vpack.c.b16 %v424, %v423
  %v512 = vpack.c.b16 %v426, %v425
  %v513 = vpack.c.b16 %v428, %v427
  %v514 = vpack.c.b16 %v430, %v429
  %v515 = vpack.c.b16 %v432, %v431
  %v516 = vpack.c.b16 %v434, %v433
  %v517 = vpack.c.b16 %v436, %v435
  %v518 = vpack.c.b16 %v438, %v437
  %v519 = vpack.c.b16 %v440, %v439
  %v520 = vpack.c.b16 %v442, %v441
  %v521 = vpack.c.b16 %v444, %v443
  %v522 = vpack.c.b16 %v446, %v445
  %v523 = vpack.c.b16 %v448, %v447
  %v524 = vpack.c.b16 %v450, %v449
  %v525 = vpack.c.b16 %v452, %v451
  %v526 = vpack.c.b16 %v454, %v453
  %v527 = vpack.c.b16 %v456, %v455
  %v528 = vpack.c.b16 %v458, %v457
  %v529 = vpack.c.b16 %v460, %v459
  %vm598 = vcmask 621568
  %v600 = vsel %vm598, %v44, 0
  %vm602 = vcmask 1045504
  %v604 = vsel %vm602, %v529, 0
  %606 = vmatpush.bf16.msra.mxu0 %v468
  %607 = vmatpush.bf16.msra.mxu0 %v467
  %608 = vmatpush.bf16.msra.mxu0 %v466
  %609 = vmatpush.bf16.msra.mxu0 %v465
  %610 = vmatpush.bf16.msra.mxu0 %v464
  %611 = vmatpush.bf16.msra.mxu0 %v463
  %612 = vmatpush.bf16.msra.mxu0 %v462
  %613 = vmatpush.bf16.msra.mxu0 %v461
  %614 = vmatmul.bf16.gmra.mxu0 %v36
  %v615 = vpop.f32.mrf.mxu0
  %v616 = vadd.f32 %v184, %v615
  %v617 = vpop.f32.mrf.mxu0
  %v618 = vadd.f32 %v184, %v617
  %619 = vdwg.mxu0
  %620 = vmatpush.bf16.msra.mxu0 %v476
  %621 = vmatpush.bf16.msra.mxu0 %v475
  %622 = vmatpush.bf16.msra.mxu0 %v474
  %623 = vmatpush.bf16.msra.mxu0 %v473
  %624 = vmatpush.bf16.msra.mxu0 %v472
  %625 = vmatpush.bf16.msra.mxu0 %v471
  %626 = vmatpush.bf16.msra.mxu0 %v470
  %627 = vmatpush.bf16.msra.mxu0 %v469
  %628 = vmatmul.bf16.gmra.mxu0 %v37
  %v629 = vpop.f32.mrf.mxu0
  %v630 = vadd.f32 %v616, %v629
  %v631 = vpop.f32.mrf.mxu0
  %v632 = vadd.f32 %v618, %v631
  %633 = vdwg.mxu0
  %634 = vmatpush.bf16.msra.mxu0 %v484
  %635 = vmatpush.bf16.msra.mxu0 %v483
  %636 = vmatpush.bf16.msra.mxu0 %v482
  %637 = vmatpush.bf16.msra.mxu0 %v481
  %638 = vmatpush.bf16.msra.mxu0 %v480
  %639 = vmatpush.bf16.msra.mxu0 %v479
  %640 = vmatpush.bf16.msra.mxu0 %v478
  %641 = vmatpush.bf16.msra.mxu0 %v477
  %642 = vmatmul.bf16.gmra.mxu0 %v38
  %v643 = vpop.f32.mrf.mxu0
  %v644 = vadd.f32 %v630, %v643
  %v645 = vpop.f32.mrf.mxu0
  %v646 = vadd.f32 %v632, %v645
  %647 = vdwg.mxu0
  %648 = vmatpush.bf16.msra.mxu0 %v492
  %649 = vmatpush.bf16.msra.mxu0 %v491
  %650 = vmatpush.bf16.msra.mxu0 %v490
  %651 = vmatpush.bf16.msra.mxu0 %v489
  %652 = vmatpush.bf16.msra.mxu0 %v488
  %653 = vmatpush.bf16.msra.mxu0 %v487
  %654 = vmatpush.bf16.msra.mxu0 %v486
  %655 = vmatpush.bf16.msra.mxu0 %v485
  %656 = vmatmul.bf16.gmra.mxu0 %v39
  %v657 = vpop.f32.mrf.mxu0
  %v658 = vadd.f32 %v644, %v657
  %v659 = vpop.f32.mrf.mxu0
  %v660 = vadd.f32 %v646, %v659
  %661 = vdwg.mxu0
  %662 = vmatpush.bf16.msra.mxu0 %v500
  %663 = vmatpush.bf16.msra.mxu0 %v499
  %664 = vmatpush.bf16.msra.mxu0 %v498
  %665 = vmatpush.bf16.msra.mxu0 %v497
  %666 = vmatpush.bf16.msra.mxu0 %v496
  %667 = vmatpush.bf16.msra.mxu0 %v495
  %668 = vmatpush.bf16.msra.mxu0 %v494
  %669 = vmatpush.bf16.msra.mxu0 %v493
  %670 = vmatmul.bf16.gmra.mxu0 %v40
  %v671 = vpop.f32.mrf.mxu0
  %v672 = vadd.f32 %v658, %v671
  %v673 = vpop.f32.mrf.mxu0
  %v674 = vadd.f32 %v660, %v673
  %675 = vdwg.mxu0
  %676 = vmatpush.bf16.msra.mxu0 %v508
  %677 = vmatpush.bf16.msra.mxu0 %v507
  %678 = vmatpush.bf16.msra.mxu0 %v506
  %679 = vmatpush.bf16.msra.mxu0 %v505
  %680 = vmatpush.bf16.msra.mxu0 %v504
  %681 = vmatpush.bf16.msra.mxu0 %v503
  %682 = vmatpush.bf16.msra.mxu0 %v502
  %683 = vmatpush.bf16.msra.mxu0 %v501
  %684 = vmatmul.bf16.gmra.mxu0 %v41
  %v685 = vpop.f32.mrf.mxu0
  %v686 = vadd.f32 %v672, %v685
  %v687 = vpop.f32.mrf.mxu0
  %v688 = vadd.f32 %v674, %v687
  %689 = vdwg.mxu0
  %690 = vmatpush.bf16.msra.mxu0 %v516
  %691 = vmatpush.bf16.msra.mxu0 %v515
  %692 = vmatpush.bf16.msra.mxu0 %v514
  %693 = vmatpush.bf16.msra.mxu0 %v513
  %694 = vmatpush.bf16.msra.mxu0 %v512
  %695 = vmatpush.bf16.msra.mxu0 %v511
  %696 = vmatpush.bf16.msra.mxu0 %v510
  %697 = vmatpush.bf16.msra.mxu0 %v509
  %698 = vmatmul.bf16.gmra.mxu0 %v42
  %v699 = vpop.f32.mrf.mxu0
  %v700 = vadd.f32 %v686, %v699
  %v701 = vpop.f32.mrf.mxu0
  %v702 = vadd.f32 %v688, %v701
  %703 = vdwg.mxu0
  %704 = vmatpush.bf16.msra.mxu0 %v524
  %705 = vmatpush.bf16.msra.mxu0 %v523
  %706 = vmatpush.bf16.msra.mxu0 %v522
  %707 = vmatpush.bf16.msra.mxu0 %v521
  %708 = vmatpush.bf16.msra.mxu0 %v520
  %709 = vmatpush.bf16.msra.mxu0 %v519
  %710 = vmatpush.bf16.msra.mxu0 %v518
  %711 = vmatpush.bf16.msra.mxu0 %v517
  %712 = vmatmul.bf16.gmra.mxu0 %v43
  %v713 = vpop.f32.mrf.mxu0
  %v714 = vadd.f32 %v700, %v713
  %v715 = vpop.f32.mrf.mxu0
  %v716 = vadd.f32 %v702, %v715
  %717 = vdwg.mxu0
  %718 = vmatpush.bf16.msra.mxu0 0
  %719 = vmatpush.bf16.msra.mxu0 0
  %720 = vmatpush.bf16.msra.mxu0 0
  %721 = vmatpush.bf16.msra.mxu0 %v604
  %722 = vmatpush.bf16.msra.mxu0 %v528
  %723 = vmatpush.bf16.msra.mxu0 %v527
  %724 = vmatpush.bf16.msra.mxu0 %v526
  %725 = vmatpush.bf16.msra.mxu0 %v525
  %726 = vmatmul.bf16.gmra.mxu0 %v600
  %v727 = vpop.f32.mrf.mxu0
  %v728 = vadd.f32 %v714, %v727
  %v729 = vpop.f32.mrf.mxu0
  %v730 = vadd.f32 %v716, %v729
  %731 = vdwg.mxu0
  %v732 = vxor.u32 %v728, 2147483648
  %v733 = vxor.u32 %v730, 2147483648
  %v734 = vmul.f32 %v732, 1.442695
  %v735 = vpow.pop %v734
  %v736 = vmul.f32 %v733, 1.442695
  %v737 = vpow.pop %v736
  %v738 = vadd.f32 %v735, 1.0
  %v739 = vadd.f32 %v737, 1.0
  %v740 = vrcp.pop %v738
  %v741 = vmul.f32 %v738, %v740
  %v742 = vsub.f32 1.0, %v741
  %v743 = vmul.f32 %v740, %v742
  %v744 = vadd.f32 %v740, %v743
  %vm745 = vweird.f32 %v738
  %vm746 = vweird.f32 %v740
  %vm747 = vmor %vm745, %vm746
  %v748 = vsel %vm747, %v740, %v744
  %v749 = vand.u32 2147483647, %v738
  %vm750 = vcmp.eq.f32.partialorder %v749, 8.507059e+37
  %v751 = vand.u32 %v738, 2147483648
  %v752 = vor.u32 1.1754944e-38, %v751
  %v753 = vsel %vm750, %v752, %v748
  %v754 = vmul.f32 1.0, %v753
  %v755 = vrcp.pop %v739
  %v756 = vmul.f32 %v739, %v755
  %v757 = vsub.f32 1.0, %v756
  %v758 = vmul.f32 %v755, %v757
  %v759 = vadd.f32 %v755, %v758
  %vm760 = vweird.f32 %v739
  %vm761 = vweird.f32 %v755
  %vm762 = vmor %vm760, %vm761
  %v763 = vsel %vm762, %v755, %v759
  %v764 = vand.u32 2147483647, %v739
  %vm765 = vcmp.eq.f32.partialorder %v764, 8.507059e+37
  %v766 = vand.u32 %v739, 2147483648
  %v767 = vor.u32 1.1754944e-38, %v766
  %v768 = vsel %vm765, %v767, %v763
  %v769 = vmul.f32 1.0, %v768
  %v770 = vld [vmem:[%s2] sm:$0xff]
  %v771 = vld [vmem:[%s2 + $0x8] sm:$0xff]
  %v772 = vld [vmem:[%s2 + $0x10] sm:$0xf]
  %v773 = vld [vmem:[%s3 + $0x1] sm:$0x1]
  %v774 = vperm.slane %v773, 0
  %vm775 = vcmask 162816
  %v777 = vsel %vm775, %v754, 0
  %v780 = vsel %vm775, %v769, 0
  %vm782 = vcmask 1043456
  %v784 = vsel %vm782, %v772, 0
  %786 = vmatpush.msra.mxu0 0.0
  %787 = vmatpush.msra.mxu0 0.0
  %788 = vmatpush.msra.mxu0 0.0
  %789 = vmatpush.msra.mxu0 0.0
  %790 = vmatpush.msra.mxu0 0.0
  %791 = vmatpush.msra.mxu0 0.0
  %792 = vmatpush.msra.mxu0 0.0
  %793 = vmatpush.msra.mxu0 0.0
  %794 = vmatpush.msra.mxu0 0.0
  %795 = vmatpush.msra.mxu0 0.0
  %796 = vmatpush.msra.mxu0 0.0
  %797 = vmatpush.msra.mxu0 0.0
  %798 = vmatpush.msra.mxu0 0.0
  %799 = vmatpush.msra.mxu0 %v784
  %800 = vmatpush.msra.mxu0 %v771
  %801 = vmatpush.msra.mxu0 %v770
  %802 = vmatmul.f32.gmra.mxu0 %v777
  %v803 = vpop.f32.mrf.mxu0
  %v804 = vadd.f32 %v774, %v803
  %805 = vmatmul.f32.gmra.mxu0 %v780
  %v806 = vpop.f32.mrf.mxu0
  %v807 = vadd.f32 %v774, %v806
  %808 = vdwg.mxu0
  %v809 = vxor.u32 %v804, 2147483648
  %v810 = vxor.u32 %v807, 2147483648
  %v811 = vmul.f32 %v809, 1.442695
  %v812 = vpow.pop %v811
  %v813 = vmul.f32 %v810, 1.442695
  %v814 = vpow.pop %v813
  %v815 = vadd.f32 %v812, 1.0
  %v816 = vadd.f32 %v814, 1.0
  %v817 = vrcp.pop %v815
  %v818 = vmul.f32 %v815, %v817
  %v819 = vsub.f32 1.0, %v818
  %v820 = vmul.f32 %v817, %v819
  %v821 = vadd.f32 %v817, %v820
  %vm822 = vweird.f32 %v815
  %vm823 = vweird.f32 %v817
  %vm824 = vmor %vm822, %vm823
  %v825 = vsel %vm824, %v817, %v821
  %v826 = vand.u32 2147483647, %v815
  %vm827 = vcmp.eq.f32.partialorder %v826, 8.507059e+37
  %v828 = vand.u32 %v815, 2147483648
  %v829 = vor.u32 1.1754944e-38, %v828
  %v830 = vsel %vm827, %v829, %v825
  %v831 = vmul.f32 1.0, %v830
  %v832 = vrcp.pop %v816
  %v833 = vmul.f32 %v816, %v832
  %v834 = vsub.f32 1.0, %v833
  %v835 = vmul.f32 %v832, %v834
  %v836 = vadd.f32 %v832, %v835
  %vm837 = vweird.f32 %v816
  %vm838 = vweird.f32 %v832
  %vm839 = vmor %vm837, %vm838
  %v840 = vsel %vm839, %v832, %v836
  %v841 = vand.u32 2147483647, %v816
  %vm842 = vcmp.eq.f32.partialorder %v841, 8.507059e+37
  %v843 = vand.u32 %v816, 2147483648
  %v844 = vor.u32 1.1754944e-38, %v843
  %v845 = vsel %vm842, %v844, %v840
  %v846 = vmul.f32 1.0, %v845
  %s847 = scalar_lea.vmem %s2, 24
  %v848 = vld [vmem:[%s847] sm:$0xff]
  %v849 = vld [vmem:[%s847 + $0x8] sm:$0xff]
  %v850 = vld [vmem:[%s847 + $0x10] sm:$0xf]
  %v851 = vld [vmem:[%s3 + $0x2] sm:$0x1]
  %v852 = vperm.slane %v851, 0
  %v854 = vsel %vm775, %v831, 0
  %v857 = vsel %vm775, %v846, 0
  %v860 = vsel %vm782, %v850, 0
  %862 = vmatpush.msra.mxu0 0.0
  %863 = vmatpush.msra.mxu0 0.0
  %864 = vmatpush.msra.mxu0 0.0
  %865 = vmatpush.msra.mxu0 0.0
  %866 = vmatpush.msra.mxu0 0.0
  %867 = vmatpush.msra.mxu0 0.0
  %868 = vmatpush.msra.mxu0 0.0
  %869 = vmatpush.msra.mxu0 0.0
  %870 = vmatpush.msra.mxu0 0.0
  %871 = vmatpush.msra.mxu0 0.0
  %872 = vmatpush.msra.mxu0 0.0
  %873 = vmatpush.msra.mxu0 0.0
  %874 = vmatpush.msra.mxu0 0.0
  %875 = vmatpush.msra.mxu0 %v860
  %876 = vmatpush.msra.mxu0 %v849
  %877 = vmatpush.msra.mxu0 %v848
  %878 = vmatmul.f32.gmra.mxu0 %v854
  %v879 = vpop.f32.mrf.mxu0
  %v880 = vadd.f32 %v852, %v879
  %881 = vmatmul.f32.gmra.mxu0 %v857
  %v882 = vpop.f32.mrf.mxu0
  %v883 = vadd.f32 %v852, %v882
  %884 = vdwg.mxu0
  %v885 = vxor.u32 %v880, 2147483648
  %v886 = vxor.u32 %v883, 2147483648
  %v887 = vmul.f32 %v885, 1.442695
  %v888 = vpow.pop %v887
  %v889 = vmul.f32 %v886, 1.442695
  %v890 = vpow.pop %v889
  %v891 = vadd.f32 %v888, 1.0
  %v892 = vadd.f32 %v890, 1.0
  %v893 = vrcp.pop %v891
  %v894 = vmul.f32 %v891, %v893
  %v895 = vsub.f32 1.0, %v894
  %v896 = vmul.f32 %v893, %v895
  %v897 = vadd.f32 %v893, %v896
  %vm898 = vweird.f32 %v891
  %vm899 = vweird.f32 %v893
  %vm900 = vmor %vm898, %vm899
  %v901 = vsel %vm900, %v893, %v897
  %v902 = vand.u32 2147483647, %v891
  %vm903 = vcmp.eq.f32.partialorder %v902, 8.507059e+37
  %v904 = vand.u32 %v891, 2147483648
  %v905 = vor.u32 1.1754944e-38, %v904
  %v906 = vsel %vm903, %v905, %v901
  %v907 = vmul.f32 1.0, %v906
  %v908 = vrcp.pop %v892
  %v909 = vmul.f32 %v892, %v908
  %v910 = vsub.f32 1.0, %v909
  %v911 = vmul.f32 %v908, %v910
  %v912 = vadd.f32 %v908, %v911
  %vm913 = vweird.f32 %v892
  %vm914 = vweird.f32 %v908
  %vm915 = vmor %vm913, %vm914
  %v916 = vsel %vm915, %v908, %v912
  %v917 = vand.u32 2147483647, %v892
  %vm918 = vcmp.eq.f32.partialorder %v917, 8.507059e+37
  %v919 = vand.u32 %v892, 2147483648
  %v920 = vor.u32 1.1754944e-38, %v919
  %v921 = vsel %vm918, %v920, %v916
  %v922 = vmul.f32 1.0, %v921
  %s923 = scalar_lea.vmem %s2, 48
  %v924 = vld [vmem:[%s923] sm:$0xff]
  %v925 = vld [vmem:[%s923 + $0x8] sm:$0xff]
  %v926 = vld [vmem:[%s923 + $0x10] sm:$0xf]
  %v927 = vld [vmem:[%s3 + $0x3] sm:$0x1]
  %v928 = vperm.slane %v927, 0
  %v930 = vsel %vm775, %v907, 0
  %v933 = vsel %vm775, %v922, 0
  %v936 = vsel %vm782, %v926, 0
  %938 = vmatpush.msra.mxu0 0.0
  %939 = vmatpush.msra.mxu0 0.0
  %940 = vmatpush.msra.mxu0 0.0
  %941 = vmatpush.msra.mxu0 0.0
  %942 = vmatpush.msra.mxu0 0.0
  %943 = vmatpush.msra.mxu0 0.0
  %944 = vmatpush.msra.mxu0 0.0
  %945 = vmatpush.msra.mxu0 0.0
  %946 = vmatpush.msra.mxu0 0.0
  %947 = vmatpush.msra.mxu0 0.0
  %948 = vmatpush.msra.mxu0 0.0
  %949 = vmatpush.msra.mxu0 0.0
  %950 = vmatpush.msra.mxu0 0.0
  %951 = vmatpush.msra.mxu0 %v936
  %952 = vmatpush.msra.mxu0 %v925
  %953 = vmatpush.msra.mxu0 %v924
  %954 = vmatmul.f32.gmra.mxu0 %v930
  %v955 = vpop.f32.mrf.mxu0
  %v956 = vadd.f32 %v928, %v955
  %957 = vmatmul.f32.gmra.mxu0 %v933
  %v958 = vpop.f32.mrf.mxu0
  %v959 = vadd.f32 %v928, %v958
  %960 = vdwg.mxu0
  %v961 = vxor.u32 %v956, 2147483648
  %v962 = vxor.u32 %v959, 2147483648
  %v963 = vmul.f32 %v961, 1.442695
  %v964 = vpow.pop %v963
  %v965 = vmul.f32 %v962, 1.442695
  %v966 = vpow.pop %v965
  %v967 = vadd.f32 %v964, 1.0
  %v968 = vadd.f32 %v966, 1.0
  %v969 = vrcp.pop %v967
  %v970 = vmul.f32 %v967, %v969
  %v971 = vsub.f32 1.0, %v970
  %v972 = vmul.f32 %v969, %v971
  %v973 = vadd.f32 %v969, %v972
  %vm974 = vweird.f32 %v967
  %vm975 = vweird.f32 %v969
  %vm976 = vmor %vm974, %vm975
  %v977 = vsel %vm976, %v969, %v973
  %v978 = vand.u32 2147483647, %v967
  %vm979 = vcmp.eq.f32.partialorder %v978, 8.507059e+37
  %v980 = vand.u32 %v967, 2147483648
  %v981 = vor.u32 1.1754944e-38, %v980
  %v982 = vsel %vm979, %v981, %v977
  %v983 = vmul.f32 1.0, %v982
  %v984 = vrcp.pop %v968
  %v985 = vmul.f32 %v968, %v984
  %v986 = vsub.f32 1.0, %v985
  %v987 = vmul.f32 %v984, %v986
  %v988 = vadd.f32 %v984, %v987
  %vm989 = vweird.f32 %v968
  %vm990 = vweird.f32 %v984
  %vm991 = vmor %vm989, %vm990
  %v992 = vsel %vm991, %v984, %v988
  %v993 = vand.u32 2147483647, %v968
  %vm994 = vcmp.eq.f32.partialorder %v993, 8.507059e+37
  %v995 = vand.u32 %v968, 2147483648
  %v996 = vor.u32 1.1754944e-38, %v995
  %v997 = vsel %vm994, %v996, %v992
  %v998 = vmul.f32 1.0, %v997
  %s999 = scalar_lea.vmem %s2, 72
  %v1000 = vld [vmem:[%s999] sm:$0xff]
  %v1001 = vld [vmem:[%s999 + $0x8] sm:$0xff]
  %v1002 = vld [vmem:[%s999 + $0x10] sm:$0xf]
  %v1003 = vld [vmem:[%s3 + $0x4] sm:$0x1]
  %v1004 = vperm.slane %v1003, 0
  %v1006 = vsel %vm775, %v983, 0
  %v1009 = vsel %vm775, %v998, 0
  %v1012 = vsel %vm782, %v1002, 0
  %1014 = vmatpush.msra.mxu0 0.0
  %1015 = vmatpush.msra.mxu0 0.0
  %1016 = vmatpush.msra.mxu0 0.0
  %1017 = vmatpush.msra.mxu0 0.0
  %1018 = vmatpush.msra.mxu0 0.0
  %1019 = vmatpush.msra.mxu0 0.0
  %1020 = vmatpush.msra.mxu0 0.0
  %1021 = vmatpush.msra.mxu0 0.0
  %1022 = vmatpush.msra.mxu0 0.0
  %1023 = vmatpush.msra.mxu0 0.0
  %1024 = vmatpush.msra.mxu0 0.0
  %1025 = vmatpush.msra.mxu0 0.0
  %1026 = vmatpush.msra.mxu0 0.0
  %1027 = vmatpush.msra.mxu0 %v1012
  %1028 = vmatpush.msra.mxu0 %v1001
  %1029 = vmatpush.msra.mxu0 %v1000
  %1030 = vmatmul.f32.gmra.mxu0 %v1006
  %v1031 = vpop.f32.mrf.mxu0
  %v1032 = vadd.f32 %v1004, %v1031
  %1033 = vmatmul.f32.gmra.mxu0 %v1009
  %v1034 = vpop.f32.mrf.mxu0
  %v1035 = vadd.f32 %v1004, %v1034
  %1036 = vdwg.mxu0
  %v1037 = vxor.u32 %v1032, 2147483648
  %v1038 = vxor.u32 %v1035, 2147483648
  %v1039 = vmul.f32 %v1037, 1.442695
  %v1040 = vpow.pop %v1039
  %v1041 = vmul.f32 %v1038, 1.442695
  %v1042 = vpow.pop %v1041
  %v1043 = vadd.f32 %v1040, 1.0
  %v1044 = vadd.f32 %v1042, 1.0
  %v1045 = vrcp.pop %v1043
  %v1046 = vmul.f32 %v1043, %v1045
  %v1047 = vsub.f32 1.0, %v1046
  %v1048 = vmul.f32 %v1045, %v1047
  %v1049 = vadd.f32 %v1045, %v1048
  %vm1050 = vweird.f32 %v1043
  %vm1051 = vweird.f32 %v1045
  %vm1052 = vmor %vm1050, %vm1051
  %v1053 = vsel %vm1052, %v1045, %v1049
  %v1054 = vand.u32 2147483647, %v1043
  %vm1055 = vcmp.eq.f32.partialorder %v1054, 8.507059e+37
  %v1056 = vand.u32 %v1043, 2147483648
  %v1057 = vor.u32 1.1754944e-38, %v1056
  %v1058 = vsel %vm1055, %v1057, %v1053
  %v1059 = vmul.f32 1.0, %v1058
  %v1060 = vrcp.pop %v1044
  %v1061 = vmul.f32 %v1044, %v1060
  %v1062 = vsub.f32 1.0, %v1061
  %v1063 = vmul.f32 %v1060, %v1062
  %v1064 = vadd.f32 %v1060, %v1063
  %vm1065 = vweird.f32 %v1044
  %vm1066 = vweird.f32 %v1060
  %vm1067 = vmor %vm1065, %vm1066
  %v1068 = vsel %vm1067, %v1060, %v1064
  %v1069 = vand.u32 2147483647, %v1044
  %vm1070 = vcmp.eq.f32.partialorder %v1069, 8.507059e+37
  %v1071 = vand.u32 %v1044, 2147483648
  %v1072 = vor.u32 1.1754944e-38, %v1071
  %v1073 = vsel %vm1070, %v1072, %v1068
  %v1074 = vmul.f32 1.0, %v1073
  %s1075 = scalar_lea.vmem %s2, 96
  %v1076 = vld [vmem:[%s1075] sm:$0xff]
  %v1077 = vld [vmem:[%s1075 + $0x8] sm:$0xff]
  %v1078 = vld [vmem:[%s1075 + $0x10] sm:$0xf]
  %v1080 = vsel %vm775, %v1059, 0
  %v1083 = vsel %vm775, %v1074, 0
  %v1086 = vsel %vm782, %v1078, 0
  %1088 = vmatpush.msra.mxu0 0.0
  %1089 = vmatpush.msra.mxu0 0.0
  %1090 = vmatpush.msra.mxu0 0.0
  %1091 = vmatpush.msra.mxu0 0.0
  %1092 = vmatpush.msra.mxu0 0.0
  %1093 = vmatpush.msra.mxu0 0.0
  %1094 = vmatpush.msra.mxu0 0.0
  %1095 = vmatpush.msra.mxu0 0.0
  %1096 = vmatpush.msra.mxu0 0.0
  %1097 = vmatpush.msra.mxu0 0.0
  %1098 = vmatpush.msra.mxu0 0.0
  %1099 = vmatpush.msra.mxu0 0.0
  %1100 = vmatpush.msra.mxu0 0.0
  %1101 = vmatpush.msra.mxu0 %v1086
  %1102 = vmatpush.msra.mxu0 %v1077
  %1103 = vmatpush.msra.mxu0 %v1076
  %1104 = vmatmul.f32.gmra.mxu0 %v1080
  %v1105 = vpop.f32.mrf.mxu0
  %v1106 = vadd.f32 0.0, %v1105
  %1107 = vmatmul.f32.gmra.mxu0 %v1083
  %v1108 = vpop.f32.mrf.mxu0
  %v1109 = vadd.f32 0.0, %v1108
  %1110 = vdwg.mxu0
  %v1111 = vld [vmem:[%s3 + $0x5] sm:$0x1]
  %v1112 = vperm.slane %v1111, 0
  %v1113 = vadd.f32 %v1106, %v1112
  %v1114 = vadd.f32 %v1109, %v1112
  %v1115 = vxor.u32 %v1113, 2147483648
  %v1116 = vxor.u32 %v1114, 2147483648
  %v1117 = vmul.f32 %v1115, 1.442695
  %v1118 = vpow.pop %v1117
  %v1119 = vmul.f32 %v1116, 1.442695
  %v1120 = vpow.pop %v1119
  %v1121 = vadd.f32 %v1118, 1.0
  %v1122 = vadd.f32 %v1120, 1.0
  %v1123 = vrcp.pop %v1121
  %v1124 = vmul.f32 %v1121, %v1123
  %v1125 = vsub.f32 1.0, %v1124
  %v1126 = vmul.f32 %v1123, %v1125
  %v1127 = vadd.f32 %v1123, %v1126
  %vm1128 = vweird.f32 %v1121
  %vm1129 = vweird.f32 %v1123
  %vm1130 = vmor %vm1128, %vm1129
  %v1131 = vsel %vm1130, %v1123, %v1127
  %v1132 = vand.u32 2147483647, %v1121
  %vm1133 = vcmp.eq.f32.partialorder %v1132, 8.507059e+37
  %v1134 = vand.u32 %v1121, 2147483648
  %v1135 = vor.u32 1.1754944e-38, %v1134
  %v1136 = vsel %vm1133, %v1135, %v1131
  %v1137 = vmul.f32 1.0, %v1136
  %v1138 = vrcp.pop %v1122
  %v1139 = vmul.f32 %v1122, %v1138
  %v1140 = vsub.f32 1.0, %v1139
  %v1141 = vmul.f32 %v1138, %v1140
  %v1142 = vadd.f32 %v1138, %v1141
  %vm1143 = vweird.f32 %v1122
  %vm1144 = vweird.f32 %v1138
  %vm1145 = vmor %vm1143, %vm1144
  %v1146 = vsel %vm1145, %v1138, %v1142
  %v1147 = vand.u32 2147483647, %v1122
  %vm1148 = vcmp.eq.f32.partialorder %v1147, 8.507059e+37
  %v1149 = vand.u32 %v1122, 2147483648
  %v1150 = vor.u32 1.1754944e-38, %v1149
  %v1151 = vsel %vm1148, %v1150, %v1146
  %v1152 = vmul.f32 1.0, %v1151
  %vm1153 = vcmask 7168
  %1154 = vst.msk [vmem:[%s4] sm:$0xff] %vm1153, %v1137
  %1155 = vst.msk [vmem:[%s4 + $0x8] sm:$0xff] %vm1153, %v1152
  // Predicated region
  $region18: #{minha_net_forward.1} parent=0 // pred_check
    _
  $region19: #{minha_net_forward.1} parent=0 // pred_check_branch
    %1157 = sbr.rel (0) target = $region21
  $region20: #{minha_net_forward.1} parent=0 // pred_region
    _
  $region21: #{minha_net_forward.1} parent=0 // pred_fallthru
    _
  // Predicated region
  $region22: #{minha_net_forward.1} parent=0 // pred_check
    _
  $region23: #{minha_net_forward.1} parent=0 // pred_check_branch
    %1159 = sbr.rel (0) target = $region25
  $region24: #{minha_net_forward.1} parent=0 // pred_region
    _
  $region25: #{minha_net_forward.1} parent=0 // pred_fallthru
    _

</llo_original>
